<compile_context>
chip_gen: v7x
topology: tpu7x:2x2x1
jax: 0.10.0
libtpu: 0.0.40
codegen_flags: <defaults>
</compile_context>

<pallas_src>
import functools

import jax
import jax.numpy as jnp
from jax.experimental import pallas as pl
from jax.experimental.pallas import tpu as pltpu

LANE = 128
SUBLANE = 8


def _focal_kernel(pred_ref, tgt_ref, out_ref, *, alpha, gamma, n, tile_rows):
    i = pl.program_id(0)

    x = pred_ref[...].astype(jnp.float32)
    t = tgt_ref[...].astype(jnp.float32)

    # Numerically-stable BCE-with-logits (same formulation PyTorch uses).
    ce = jnp.maximum(x, 0.0) - x * t + jnp.log1p(jnp.exp(-jnp.abs(x)))

    alpha_w = t * alpha + (1.0 - t) * (1.0 - alpha)
    # pt intentionally uses raw logits (NOT sigmoid(pred)) and an exact
    # compare against 1.0 — this mirrors the quoted PyTorch module verbatim.
    pt = jnp.where(t == 1.0, x, 1.0 - x)
    om_pt = 1.0 - pt

    g = float(gamma)
    if g.is_integer():
        # Integer power via multiply chain: well-defined for negative bases,
        # matching torch's integer pow (pred can exceed 1 so 1-pt can be < 0).
        focal_w = jnp.ones_like(om_pt)
        for _ in range(int(g)):
            focal_w = focal_w * om_pt
    else:
        focal_w = jnp.power(om_pt, g)  # NaN for negative base, same as torch

    term = alpha_w * focal_w * ce

    # Zero the padded tail. Only the last tile has padding, but the
    # iota+compare+select is cheap VPU work fully hidden under the input DMA.
    row = jax.lax.broadcasted_iota(jnp.int32, term.shape, 0)
    lane = jax.lax.broadcasted_iota(jnp.int32, term.shape, 1)
    flat_in_tile = row * LANE + lane
    remaining = n - i * (tile_rows * LANE)
    term = jnp.where(flat_in_tile < remaining, term, 0.0)

    # Partial tree reduction: fold tile rows into one vreg-shaped (8,128) slab
    # (pure elementwise vector adds; no cross-lane reduction, no SMEM scalar).
    partial = jnp.sum(term.reshape(tile_rows // SUBLANE, SUBLANE, LANE), axis=0)
    out_ref[...] = partial.reshape(1, SUBLANE, LANE)


def focal_loss(pred, target, alpha=0.25, gamma=2, *, tile_rows=1024):
    assert pred.shape == target.shape
    n = int(pred.size)

    # Stream inputs in their native dtype; cast to f32 inside the kernel.
    p = pred.reshape(-1)
    t = target.reshape(-1)

    rows = -(-n // LANE)                          # ceil(n / 128)
    rows8 = -(-rows // SUBLANE) * SUBLANE         # round up to sublane multiple
    tr = min(int(tile_rows), rows8)               # clamp tile for small inputs
    tr = -(-tr // SUBLANE) * SUBLANE              # keep tile a sublane multiple
    rows_padded = -(-rows // tr) * tr             # pad rows up to tile multiple
    pad = rows_padded * LANE - n
    if pad:
        p = jnp.pad(p, (0, pad))
        t = jnp.pad(t, (0, pad))
    p = p.reshape(rows_padded, LANE)
    t = t.reshape(rows_padded, LANE)

    num_tiles = rows_padded // tr

    kernel = functools.partial(
        _focal_kernel,
        alpha=float(alpha),
        gamma=gamma,
        n=n,
        tile_rows=tr,
    )

    partials = pl.pallas_call(
        kernel,
        out_shape=jax.ShapeDtypeStruct((num_tiles, SUBLANE, LANE), jnp.float32),
        grid=(num_tiles,),
        in_specs=[
            pl.BlockSpec((tr, LANE), lambda i: (i, 0)),
            pl.BlockSpec((tr, LANE), lambda i: (i, 0)),
        ],
        out_specs=pl.BlockSpec((1, SUBLANE, LANE), lambda i: (i, 0, 0)),
        compiler_params=pltpu.CompilerParams(
            dimension_semantics=("parallel",)),   # independent per-tile partials
    )(p, t)

    # Tiny final reduction over (num_tiles, 8, 128) partials.
    return jnp.sum(partials) / n


def focal_loss_ref(pred, target, alpha=0.25, gamma=2):
    x = pred.astype(jnp.float32)
    t = target.astype(jnp.float32)
    ce = jnp.maximum(x, 0.0) - x * t + jnp.log1p(jnp.exp(-jnp.abs(x)))
    a = t * alpha + (1.0 - t) * (1.0 - alpha)
    pt = jnp.where(t == 1.0, x, 1.0 - x)
    return jnp.mean(a * (1.0 - pt) ** gamma * ce)


if __name__ == "__main__":
    key = jax.random.PRNGKey(0)
    kp, kt = jax.random.split(key)

    # Small shapes consistent with a dense prediction task (NCHW logits + 0/1 targets).
    shape = (2, 4, 16, 16)
    pred = jax.random.normal(kp, shape, dtype=jnp.float32)
    target = jax.random.bernoulli(kt, p=0.3, shape=shape).astype(jnp.float32)

    loss = jax.block_until_ready(focal_loss(pred, target, alpha=0.25, gamma=2))
    ref = jax.block_until_ready(focal_loss_ref(pred, target, alpha=0.25, gamma=2))

    assert jnp.allclose(loss, ref, rtol=1e-5, atol=1e-6), (loss, ref)
    print("KERNEL_OK")
</pallas_src>

<mosaic_0001>
module attributes {stable_mosaic.version = 11 : i64} {
  func.func @_focal_kernel(%arg0: i32, %arg1: memref<16x128xf32, #tpu.memory_space<vmem>>, %arg2: memref<16x128xf32, #tpu.memory_space<vmem>>, %arg3: memref<1x8x128xf32, #tpu.memory_space<vmem>>) attributes {dimension_semantics = [#tpu.dimension_semantics<parallel>], iteration_bounds = array<i64: 1>, scalar_prefetch = 0 : i64, scratch_operands = 0 : i64, tpu.core_type = #tpu.core_type<tc>, window_params = [{transform_indices = @transform_0, window_bounds = array<i64: 16, 128>}, {transform_indices = @transform_1, window_bounds = array<i64: 16, 128>}, {transform_indices = @transform_2, window_bounds = array<i64: 1, 8, 128>}]} {
    %c0 = arith.constant 0 : index
    %c0_0 = arith.constant 0 : index
    %0 = vector.load %arg1[%c0, %c0_0] : memref<16x128xf32, #tpu.memory_space<vmem>>, vector<16x128xf32>
    %c0_1 = arith.constant 0 : index
    %c0_2 = arith.constant 0 : index
    %1 = vector.load %arg2[%c0_1, %c0_2] : memref<16x128xf32, #tpu.memory_space<vmem>>, vector<16x128xf32>
    %cst = arith.constant 0.000000e+00 : f32
    %2 = vector.broadcast %cst : f32 to vector<16x128xf32>
    %3 = arith.maximumf %0, %2 : vector<16x128xf32>
    %4 = arith.mulf %0, %1 : vector<16x128xf32>
    %5 = arith.subf %3, %4 : vector<16x128xf32>
    %6 = math.absf %0 : vector<16x128xf32>
    %cst_3 = arith.constant 0.000000e+00 : f32
    %7 = vector.broadcast %cst_3 : f32 to vector<16x128xf32>
    %8 = arith.subf %7, %6 : vector<16x128xf32>
    %9 = math.exp %8 : vector<16x128xf32>
    %10 = math.log1p %9 : vector<16x128xf32>
    %11 = arith.addf %5, %10 : vector<16x128xf32>
    %cst_4 = arith.constant 2.500000e-01 : f32
    %12 = vector.broadcast %cst_4 : f32 to vector<16x128xf32>
    %13 = arith.mulf %1, %12 : vector<16x128xf32>
    %cst_5 = arith.constant 1.000000e+00 : f32
    %14 = vector.broadcast %cst_5 : f32 to vector<16x128xf32>
    %15 = arith.subf %14, %1 : vector<16x128xf32>
    %cst_6 = arith.constant 7.500000e-01 : f32
    %16 = vector.broadcast %cst_6 : f32 to vector<16x128xf32>
    %17 = arith.mulf %15, %16 : vector<16x128xf32>
    %18 = arith.addf %13, %17 : vector<16x128xf32>
    %cst_7 = arith.constant 1.000000e+00 : f32
    %19 = vector.broadcast %cst_7 : f32 to vector<16x128xf32>
    %20 = arith.cmpf oeq, %1, %19 : vector<16x128xf32>
    %cst_8 = arith.constant 1.000000e+00 : f32
    %21 = vector.broadcast %cst_8 : f32 to vector<16x128xf32>
    %22 = arith.subf %21, %0 : vector<16x128xf32>
    %23 = arith.select %20, %0, %22 : vector<16x128xi1>, vector<16x128xf32>
    %cst_9 = arith.constant 1.000000e+00 : f32
    %24 = vector.broadcast %cst_9 : f32 to vector<16x128xf32>
    %25 = arith.subf %24, %23 : vector<16x128xf32>
    %cst_10 = arith.constant 1.000000e+00 : f32
    %26 = vector.broadcast %cst_10 : f32 to vector<16x128xf32>
    %27 = arith.mulf %26, %25 : vector<16x128xf32>
    %28 = arith.mulf %27, %25 : vector<16x128xf32>
    %29 = arith.mulf %18, %28 : vector<16x128xf32>
    %30 = arith.mulf %29, %11 : vector<16x128xf32>
    %31 = tpu.iota {dimensions = array<i32: 0>} : vector<16x128xi32>
    %32 = tpu.iota {dimensions = array<i32: 1>} : vector<16x128xi32>
    %c128_i32 = arith.constant 128 : i32
    %33 = vector.broadcast %c128_i32 : i32 to vector<16x128xi32>
    %34 = arith.muli %31, %33 : vector<16x128xi32>
    %35 = arith.addi %34, %32 : vector<16x128xi32>
    %c2048_i32 = arith.constant 2048 : i32
    %36 = arith.muli %arg0, %c2048_i32 : i32
    %c2048_i32_11 = arith.constant 2048 : i32
    %37 = arith.subi %c2048_i32_11, %36 : i32
    %38 = vector.broadcast %37 : i32 to vector<16x128xi32>
    %39 = arith.cmpi slt, %35, %38 : vector<16x128xi32>
    %cst_12 = arith.constant 0.000000e+00 : f32
    %40 = vector.broadcast %cst_12 : f32 to vector<16x128xf32>
    %41 = arith.select %39, %30, %40 : vector<16x128xi1>, vector<16x128xf32>
    %42 = vector.shape_cast %41 : vector<16x128xf32> to vector<2x8x128xf32>
    %cst_13 = arith.constant dense<0.000000e+00> : vector<8x128xf32>
    %43 = vector.multi_reduction <add>, %42, %cst_13 [0] : vector<2x8x128xf32> to vector<8x128xf32>
    %44 = vector.shape_cast %43 : vector<8x128xf32> to vector<1x8x128xf32>
    %c0_14 = arith.constant 0 : index
    %c0_15 = arith.constant 0 : index
    %c0_16 = arith.constant 0 : index
    %45 = vector.load %arg3[%c0_14, %c0_15, %c0_16] : memref<1x8x128xf32, #tpu.memory_space<vmem>>, vector<1x8x128xf32>
    tpu.vector_store %arg3[%c0_14, %c0_15, %c0_16], %44 {strides = array<i32>} : memref<1x8x128xf32, #tpu.memory_space<vmem>>, vector<1x8x128xf32>,
    return
  }
  func.func @transform_0(%arg0: i32) -> (i32, i32) {
    %c0_i32 = arith.constant 0 : i32
    %c0_i32_0 = arith.constant 0 : i32
    return %arg0, %c0_i32 : i32, i32
  }
  func.func @transform_1(%arg0: i32) -> (i32, i32) {
    %c0_i32 = arith.constant 0 : i32
    %c0_i32_0 = arith.constant 0 : i32
    return %arg0, %c0_i32 : i32, i32
  }
  func.func @transform_2(%arg0: i32) -> (i32, i32, i32) {
    %c0_i32 = arith.constant 0 : i32
    %c0_i32_0 = arith.constant 0 : i32
    %c0_i32_1 = arith.constant 0 : i32
    return %arg0, %c0_i32, %c0_i32_0 : i32, i32, i32
  }
}

</mosaic_0001>

<llo_original>
// kernel: tpu_custom_call.1
$region0: #{tpu_custom_call.1}
  #allocation0 [shape = 'u32[]', space=smem, size = 0x4, offset = 0x4, fixed_abs, tag = 'smem constant byte address 0x4 - core index']
  #allocation1 [shape = 'u32[144,128]{1,0:T(1,128)}', space=vmem, size = 0x12000, scoped, tag = 'internal scratch']
  %s0 = inlined_call_operand.hbm [shape: f32[16,128], index: 0, kind: input, shape index: {}]
  %s1 = inlined_call_operand.hbm [shape: f32[16,128], index: 1, kind: input, shape index: {}]
  %s2 = inlined_call_operand.hbm [shape: f32[1,8,128], index: 2, kind: output, shape index: {}]
  %s3 = sld [smem:[#allocation0]]
  $region26: #{tpu_custom_call.1} parent=0
    _
  %s5 = ssub.s32 1, %s3
  %s6 = scalar_select 0, %s5, %s3
  $region1: #{tpu_custom_call.1} parent=0
    #allocation2 [shape = 'u8[8192]{0}', space=vmem, size = 0x2000, scoped, tag = 'input window, operand 0, single buffered']
    #allocation3 [shape = 's32[1]{0}', space=sflag, size = 0x4, scoped, tag = 'scoped memory for tpu_custom_call.1']
    #allocation4 [shape = 's32[1]{0}', space=sflag, size = 0x4, scoped, tag = 'scoped memory for tpu_custom_call.1']
    #allocation5 [shape = 'u8[8192]{0}', space=vmem, size = 0x2000, scoped, tag = 'input window, operand 1, single buffered']
    #allocation6 [shape = 's32[1]{0}', space=sflag, size = 0x4, scoped, tag = 'scoped memory for tpu_custom_call.1']
    #allocation7 [shape = 'u8[4096]{0}', space=vmem, size = 0x1000, scoped, tag = 'output window, operand 0, single buffered']
    %7 = vsyncpa [#allocation3], 0
    %8 = vsyncpa [#allocation6], 0
    %9 = vsyncpa [#allocation4], 0
    // Predicated region
    $region2: #{tpu_custom_call.1} parent=1 // pred_check
      _
    $region3: #{tpu_custom_call.1} parent=1 // pred_check_branch
      %11 = sbr.rel (0) target = $region5
    $region4: #{tpu_custom_call.1} parent=1 // pred_region
      %s13 = ssub.s32 256, 256
      %14 = vsyncadd [#allocation3], %s13
      %s15 = sshll.u32 [#allocation2], 4
      %s16 = int_to_ptr.vmem [resolvable:$true] %s15
      %21 = dma.hbm_to_vmem [thread:$0]  %s0, 256, %s16, [#allocation3], 128, 128, 8
    $region5: #{tpu_custom_call.1} parent=1 // pred_fallthru
      _
    // Predicated region
    $region6: #{tpu_custom_call.1} parent=1 // pred_check
      _
    $region7: #{tpu_custom_call.1} parent=1 // pred_check_branch
      %23 = sbr.rel (0) target = $region9
    $region8: #{tpu_custom_call.1} parent=1 // pred_region
      %s25 = ssub.s32 256, 256
      %26 = vsyncadd [#allocation6], %s25
      %s27 = sshll.u32 [#allocation5], 4
      %s28 = int_to_ptr.vmem [resolvable:$true] %s27
      %33 = dma.hbm_to_vmem [thread:$0]  %s1, 256, %s28, [#allocation6], 128, 128, 8
    $region9: #{tpu_custom_call.1} parent=1 // pred_fallthru
      _
    // Predicated region
    $region10: #{tpu_custom_call.1} parent=1 // pred_check
      _
    $region11: #{tpu_custom_call.1} parent=1 // pred_check_branch
      %35 = sbr.rel (0) target = $region13
    $region12: #{tpu_custom_call.1} parent=1 // pred_region
      %36 = dma.done [#allocation3], 256
    $region13: #{tpu_custom_call.1} parent=1 // pred_fallthru
      _
    // Predicated region
    $region14: #{tpu_custom_call.1} parent=1 // pred_check
      _
    $region15: #{tpu_custom_call.1} parent=1 // pred_check_branch
      %38 = sbr.rel (0) target = $region17
    $region16: #{tpu_custom_call.1} parent=1 // pred_region
      %39 = dma.done [#allocation6], 256
    $region17: #{tpu_custom_call.1} parent=1 // pred_fallthru
      _
    %v40 = vld [vmem:[#allocation2] sm:$0xff]
    %v41 = vld [vmem:[#allocation2 + $0x8] sm:$0xff]
    %v42 = vld [vmem:[#allocation5] sm:$0xff]
    %v43 = vld [vmem:[#allocation5 + $0x8] sm:$0xff]
    %v44 = vmax.f32 %v40, 0.0
    %v45 = vmax.f32 %v41, 0.0
    %v46 = vmul.f32 %v40, %v42
    %v47 = vmul.f32 %v41, %v43
    %v48 = vsub.f32 %v44, %v46
    %v49 = vsub.f32 %v45, %v47
    %v50 = vand.u32 2147483647, %v40
    %v51 = vand.u32 2147483647, %v41
    %v52 = vsub.f32 0.0, %v50
    %v53 = vsub.f32 0.0, %v51
    %v54 = vmul.f32 %v52, 1.442695
    %v55 = vpow.pop %v54
    %v56 = vmul.f32 %v53, 1.442695
    %v57 = vpow.pop %v56
    %v58 = vadd.f32 %v55, 1.0
    %v59 = vlog2.pop %v58
    %v60 = vmul.f32 %v59, 0.6931472
    %v61 = vmul.f32 -0.5, %v55
    %v62 = vadd.f32 %v61, 1.0
    %v63 = vmul.f32 %v62, %v55
    %v64 = vand.u32 2147483647, %v55
    %vm65 = vcmp.lt.f32.partialorder %v64, 0.0004427343
    %v66 = vsel %vm65, %v63, %v60
    %v67 = vadd.f32 %v57, 1.0
    %v68 = vlog2.pop %v67
    %v69 = vmul.f32 %v68, 0.6931472
    %v70 = vmul.f32 -0.5, %v57
    %v71 = vadd.f32 %v70, 1.0
    %v72 = vmul.f32 %v71, %v57
    %v73 = vand.u32 2147483647, %v57
    %vm74 = vcmp.lt.f32.partialorder %v73, 0.0004427343
    %v75 = vsel %vm74, %v72, %v69
    %v76 = vadd.f32 %v48, %v66
    %v77 = vadd.f32 %v49, %v75
    %v78 = vmul.f32 %v42, 0.25
    %v79 = vmul.f32 %v43, 0.25
    %v80 = vsub.f32 1.0, %v42
    %v81 = vsub.f32 1.0, %v43
    %v82 = vmul.f32 %v80, 0.75
    %v83 = vmul.f32 %v81, 0.75
    %v84 = vadd.f32 %v78, %v82
    %v85 = vadd.f32 %v79, %v83
    %vm86 = vcmp.eq.f32.partialorder %v42, 1.0
    %vm87 = vcmp.eq.f32.partialorder %v43, 1.0
    %v88 = vsub.f32 1.0, %v40
    %v89 = vsub.f32 1.0, %v41
    %v90 = vsel %vm86, %v40, %v88
    %v91 = vsel %vm87, %v41, %v89
    %v92 = vsub.f32 1.0, %v90
    %v93 = vsub.f32 1.0, %v91
    %v94 = vmul.f32 %v92, %v92
    %v95 = vmul.f32 %v93, %v93
    %v96 = vmul.f32 %v84, %v94
    %v97 = vmul.f32 %v85, %v95
    %v98 = vmul.f32 %v96, %v76
    %v99 = vmul.f32 %v97, %v77
    %v100 = vlaneseq
    %v101 = vshrl.u32 %v100, 7
    %v102 = vadd.s32 %v101, 8
    %v103 = vlaneseq
    %v104 = vand.u32 %v103, 127
    %v105 = vmul.u32 %v101, 128
    %v106 = vmul.u32 %v102, 128
    %v107 = vadd.s32 %v105, %v104
    %v108 = vadd.s32 %v106, %v104
    %s109 = smul.u32 0, 2048
    %s110 = ssub.s32 2048, %s109
    %v111 = vstv %s110
    %vm112 = vcmp.lt.s32.totalorder %v107, %v111
    %vm113 = vcmp.lt.s32.totalorder %v108, %v111
    %v114 = vsel %vm112, %v98, 0.0
    %v115 = vsel %vm113, %v99, 0.0
    %v116 = vadd.f32 %v114, %v115
    %117 = vst [vmem:[#allocation7] sm:$0xff] %v116
    // Predicated region
    $region18: #{tpu_custom_call.1} parent=1 // pred_check
      _
    $region19: #{tpu_custom_call.1} parent=1 // pred_check_branch
      %119 = sbr.rel (0) target = $region21
    $region20: #{tpu_custom_call.1} parent=1 // pred_region
      %s121 = ssub.s32 128, 128
      %122 = vsyncadd [#allocation4], %s121
      %s124 = sshll.u32 [#allocation7], 4
      %s125 = int_to_ptr.vmem [resolvable:$true] %s124
      %127 = dma.vmem_to_hbm [thread:$0]  %s125, 128, %s2, [#allocation4]
    $region21: #{tpu_custom_call.1} parent=1 // pred_fallthru
      _
    // Predicated region
    $region22: #{tpu_custom_call.1} parent=1 // pred_check
      _
    $region23: #{tpu_custom_call.1} parent=1 // pred_check_branch
      %129 = sbr.rel (0) target = $region25
    $region24: #{tpu_custom_call.1} parent=1 // pred_region
      %130 = dma.done [#allocation4], 128
    $region25: #{tpu_custom_call.1} parent=1 // pred_fallthru
      _
    %131 = vsyncpa [#allocation3], 1
    %132 = vsyncpa [#allocation6], 1
    %133 = vsyncpa [#allocation4], 1

</llo_original>
